<compile_context>
chip_gen: v5e
topology: v5e:2x2
jax: 0.10.0
libtpu: 0.0.40
codegen_flags: <defaults>
</compile_context>

<pallas_src>
import functools
import math

import jax
import jax.numpy as jnp
from jax import lax
from jax.experimental import pallas as pl
from jax.experimental.pallas import tpu as pltpu


def _round_up(x: int, m: int) -> int:
    return -(-x // m) * m


def _pad_dim(arr, axis: int, mult: int):
    pad = (-arr.shape[axis]) % mult
    if pad == 0:
        return arr
    widths = [(0, 0)] * arr.ndim
    widths[axis] = (0, pad)
    return jnp.pad(arr, widths)


# --------------------------------------------------------------------------
# Kernel 1: tiled dense layer  y = x @ W + b   (W stored as [D_in, D_out])
# --------------------------------------------------------------------------
def _linear_kernel(x_ref, w_ref, b_ref, o_ref, acc_ref):
    @pl.when(pl.program_id(2) == 0)
    def _init():
        acc_ref[...] = jnp.zeros(acc_ref.shape, jnp.float32)

    # Operands arrive pre-cast to bf16; accumulate in f32 on the MXU.
    acc_ref[...] += jnp.dot(x_ref[...], w_ref[...],
                            preferred_element_type=jnp.float32)

    @pl.when(pl.program_id(2) == pl.num_programs(2) - 1)
    def _finalize():
        o_ref[...] = (acc_ref[...] + b_ref[...]).astype(o_ref.dtype)


def linear(x2d, w, b, *, out_dtype, tm=512, tn=512, tk=512):
    """y = x2d @ w + b.  x2d/w are bf16, b is f32 of shape (1, D_out)."""
    n, d_in = x2d.shape
    d_out = w.shape[1]
    tm, tn, tk = min(tm, n), min(tn, d_out), min(tk, d_in)

    # Ragged dims: pad up to the tile.  Padded contraction entries are zero
    # (exact); padded output rows/cols are sliced off below.
    x_p = _pad_dim(_pad_dim(x2d, 0, tm), 1, tk)
    w_p = _pad_dim(_pad_dim(w, 0, tk), 1, tn)
    b_p = _pad_dim(b, 1, tn)
    n_p, k_p = x_p.shape
    dn_p = w_p.shape[1]

    out = pl.pallas_call(
        _linear_kernel,
        out_shape=jax.ShapeDtypeStruct((n_p, dn_p), out_dtype),
        grid_spec=pltpu.PrefetchScalarGridSpec(
            num_scalar_prefetch=0,
            grid=(n_p // tm, dn_p // tn, k_p // tk),
            in_specs=[
                pl.BlockSpec((tm, tk), lambda i, j, k: (i, k)),
                pl.BlockSpec((tk, tn), lambda i, j, k: (k, j)),
                pl.BlockSpec((1, tn), lambda i, j, k: (0, j)),
            ],
            out_specs=pl.BlockSpec((tm, tn), lambda i, j, k: (i, j)),
            scratch_shapes=[pltpu.VMEM((tm, tn), jnp.float32)],
        ),
        compiler_params=pltpu.CompilerParams(
            dimension_semantics=("parallel", "parallel", "arbitrary")
        ),
    )(x_p, w_p, b_p)
    if (n_p, dn_p) != (n, d_out):
        out = out[:n, :d_out]
    return out


# --------------------------------------------------------------------------
# Kernel 2: flash-style multi-query causal attention, head-packed q rows,
#           triangular (scalar-prefetch-driven) grid.
# --------------------------------------------------------------------------
def _mqa_flash_kernel(qids_ref, kids_ref, q_ref, k_ref, v_ref, o_ref,
                      m_sc, l_sc, acc_sc, *, n_heads, tq, tk):
    # q_ref: (1, tq*H, hd) bf16 -- H query heads of one q tile, row = s_loc*H + h
    # k_ref/v_ref: (1, tk, hd) bf16 -- shared (multi-query) K/V tile
    t = pl.program_id(1)
    qi = qids_ref[t]          # q-block index for this step
    ki = kids_ref[t]          # kv-block index for this step
    rows = q_ref.shape[1]     # tq * n_heads

    @pl.when(ki == 0)
    def _init():
        m_sc[...] = jnp.full(m_sc.shape, -jnp.inf, jnp.float32)
        l_sc[...] = jnp.zeros(l_sc.shape, jnp.float32)
        acc_sc[...] = jnp.zeros(acc_sc.shape, jnp.float32)

    def _update(apply_mask):
        q = q_ref[0]                      # softmax scale pre-folded into Wq
        k = k_ref[0]
        v = v_ref[0]
        s = lax.dot_general(q, k, (((1,), (1,)), ((), ())),
                            preferred_element_type=jnp.float32)   # (rows, tk)
        if apply_mask:
            # Packed row r = s_loc*H + h sits at q_pos = qi*tq + r//H;
            # "k_pos > q_pos" rewritten without integer division as
            # "(ki*tk - qi*tq)*H + c*H > r" (LHS is a multiple of H).
            r_idx = lax.broadcasted_iota(jnp.int32, (rows, tk), 0)
            c_idx = lax.broadcasted_iota(jnp.int32, (rows, tk), 1)
            shift = (ki * tk - qi * tq) * n_heads
            masked = shift + c_idx * n_heads > r_idx
            s = jnp.where(masked, jnp.finfo(jnp.float32).min, s)

        m_prev = m_sc[...]
        m_new = jnp.maximum(m_prev, jnp.max(s, axis=-1, keepdims=True))
        alpha = jnp.exp(m_prev - m_new)
        p = jnp.exp(s - m_new)
        l_sc[...] = alpha * l_sc[...] + jnp.sum(p, axis=-1, keepdims=True)
        acc_sc[...] = alpha * acc_sc[...] + jnp.dot(
            p.astype(v.dtype), v, preferred_element_type=jnp.float32)
        m_sc[...] = m_new

    # Only tiles that straddle the causal diagonal need the mask (the
    # triangular step table never visits fully-masked tiles).
    needs_mask = (ki * tk + (tk - 1)) > (qi * tq)

    @pl.when(needs_mask)
    def _masked():
        _update(True)

    @pl.when(jnp.logical_not(needs_mask))
    def _unmasked():
        _update(False)

    # Last kv step for this q block: (ki+1)*tk covers the block's last q_pos.
    is_last = (ki + 1) * tk >= (qi + 1) * tq

    @pl.when(is_last)
    def _finalize():
        inv_l = pl.reciprocal(l_sc[...], approx=True)
        o_ref[0] = (acc_sc[...] * inv_l).astype(o_ref.dtype)


def mqa_flash_attention(q_packed, k, v, n_heads, *, block_kv=256, rows_cap=1024):
    # q_packed: (B, S*H, hd) bf16 (row = s*H + h) ; k, v: (B, S, hd) bf16
    B, SH, hd = q_packed.shape
    S = SH // n_heads

    tk = min(block_kv, S)                       # KV tile (256: fills v6e/v7x MXU)
    tq = max(1, rows_cap // n_heads)            # cap packed MXU M = tq * H
    if tq < S:
        tq = max(16, (tq // 16) * 16)           # keep rows sublane-aligned
    tq = min(tq, S)
    rows = tq * n_heads

    # Pad the sequence so both tilings divide it; padded K positions are
    # hidden by the causal mask, padded Q rows are sliced off afterwards.
    s_q = _round_up(S, tq)
    s_k = _round_up(s_q, tk)
    q_p = q_packed
    if s_q != S:
        q_p = jnp.pad(q_packed, ((0, 0), (0, (s_q - S) * n_heads), (0, 0)))
    k_p = jnp.pad(k, ((0, 0), (0, s_k - S), (0, 0))) if s_k != S else k
    v_p = jnp.pad(v, ((0, 0), (0, s_k - S), (0, 0))) if s_k != S else v
    n_q = s_q // tq

    # Flattened lower-triangular step table (host side, scalar-prefetched).
    qids, kids = [], []
    for qi in range(n_q):
        nk = -(-((qi + 1) * tq) // tk)
        for ki in range(nk):
            qids.append(qi)
            kids.append(ki)
    n_steps = len(qids)
    qids = jnp.asarray(qids, jnp.int32)
    kids = jnp.asarray(kids, jnp.int32)

    kernel = functools.partial(_mqa_flash_kernel, n_heads=n_heads, tq=tq, tk=tk)

    out = pl.pallas_call(
        kernel,
        out_shape=jax.ShapeDtypeStruct((B, s_q * n_heads, hd), jnp.bfloat16),
        grid_spec=pltpu.PrefetchScalarGridSpec(
            num_scalar_prefetch=2,
            grid=(B, n_steps),
            in_specs=[
                pl.BlockSpec((1, rows, hd), lambda b, t, qid, kid: (b, qid[t], 0)),
                pl.BlockSpec((1, tk, hd), lambda b, t, qid, kid: (b, kid[t], 0)),
                pl.BlockSpec((1, tk, hd), lambda b, t, qid, kid: (b, kid[t], 0)),
            ],
            out_specs=pl.BlockSpec((1, rows, hd),
                                   lambda b, t, qid, kid: (b, qid[t], 0)),
            scratch_shapes=[
                pltpu.VMEM((rows, 1), jnp.float32),    # running max  m
                pltpu.VMEM((rows, 1), jnp.float32),    # running sum  l
                pltpu.VMEM((rows, hd), jnp.float32),   # un-normalized output
            ],
        ),
        compiler_params=pltpu.CompilerParams(
            dimension_semantics=("parallel", "arbitrary")
        ),
    )(qids, kids, q_p, k_p, v_p)

    if s_q != S:
        out = out[:, : S * n_heads, :]
    return out


# --------------------------------------------------------------------------
# Parameter prep (hoisted out of the forward path): scale fold + bf16 cast
# --------------------------------------------------------------------------
def prepare_params(params, n_heads):
    d_model = params["wout"].shape[0]
    hd = d_model // n_heads
    scale = 1.0 / math.sqrt(hd)
    # Fold the softmax scale into the Q block (first d_model output columns)
    # of the fused QKV projection; exact in f32, then cast once to bf16.
    col_scale = jnp.concatenate(
        [jnp.full((d_model,), scale, jnp.float32),
         jnp.ones((2 * hd,), jnp.float32)])[None, :]
    return {
        "wqkv": (params["wqkv"].astype(jnp.float32) * col_scale).astype(jnp.bfloat16),
        "bqkv": params["bqkv"].astype(jnp.float32) * col_scale,
        "wout": params["wout"].astype(jnp.bfloat16),
        "bout": params["bout"].astype(jnp.float32),
    }


# --------------------------------------------------------------------------
# Full MultiQueryAttention forward
# --------------------------------------------------------------------------
def multi_query_attention_forward(x, prep, n_heads, *, block_kv=256,
                                  rows_cap=1024, tm=512, tn=512, tk=512):
    B, S, D = x.shape
    hd = D // n_heads
    x2d = x.reshape(B * S, D).astype(jnp.bfloat16)

    # Fused QKV projection: x read once, wide MXU N = D + 2*hd.
    qkv = linear(x2d, prep["wqkv"], prep["bqkv"], out_dtype=jnp.bfloat16,
                 tm=tm, tn=tn, tk=tk)

    # Head-packed layouts from row-major reshapes (no transposes).
    q = qkv[:, :D].reshape(B, S * n_heads, hd)        # row s*H + h
    k = qkv[:, D:D + hd].reshape(B, S, hd)
    v = qkv[:, D + hd:].reshape(B, S, hd)

    ctx = mqa_flash_attention(q, k, v, n_heads, block_kv=block_kv,
                              rows_cap=rows_cap)       # (B, S*H, hd)
    ctx2d = ctx.reshape(B * S, D)                      # == 'b h s d -> b s (h d)'

    out = linear(ctx2d, prep["wout"], prep["bout"], out_dtype=jnp.float32,
                 tm=tm, tn=tn, tk=tk)
    return out.reshape(B, S, D)


# --------------------------------------------------------------------------
# Pure-JAX f32 reference for validation
# --------------------------------------------------------------------------
def reference_forward(x, params, n_heads):
    B, S, D = x.shape
    hd = D // n_heads
    scale = 1.0 / math.sqrt(hd)
    qkv = x @ params["wqkv"] + params["bqkv"][0]
    query, key, value = qkv[..., :D], qkv[..., D:D + hd], qkv[..., D + hd:]
    q = query.reshape(B, S, n_heads, hd).transpose(0, 2, 1, 3)
    k = key.reshape(B, S, 1, hd).transpose(0, 2, 1, 3)
    v = value.reshape(B, S, 1, hd).transpose(0, 2, 1, 3)
    scores = jnp.einsum("bhqd,bxkd->bhqk", q, k) * scale
    row = jnp.arange(S)[:, None]
    col = jnp.arange(S)[None, :]
    scores = jnp.where(col > row, jnp.finfo(jnp.float32).min, scores)
    p = jax.nn.softmax(scores, axis=-1)
    ctx = jnp.einsum("bhqk,bxkd->bhqd", p, v)
    ctx = ctx.transpose(0, 2, 1, 3).reshape(B, S, D)
    return ctx @ params["wout"] + params["bout"][0]


def _run_case(key, B, S, d_model, n_heads, tol):
    hd = d_model // n_heads
    k_x, k_w1, k_b1, k_w2, k_b2 = jax.random.split(key, 5)
    x = jax.random.normal(k_x, (B, S, d_model), dtype=jnp.float32)
    lim = 1.0 / math.sqrt(d_model)
    params = {
        # stored as [D_in, D_out] so y = x @ W + b  (== x @ W_torch^T + b)
        "wqkv": jax.random.uniform(
            k_w1, (d_model, d_model + 2 * hd), jnp.float32, -lim, lim),
        "bqkv": jax.random.uniform(
            k_b1, (1, d_model + 2 * hd), jnp.float32, -lim, lim),
        "wout": jax.random.uniform(
            k_w2, (d_model, d_model), jnp.float32, -lim, lim),
        "bout": jax.random.uniform(k_b2, (1, d_model), jnp.float32, -lim, lim),
    }

    prep = prepare_params(params, n_heads)
    out = multi_query_attention_forward(x, prep, n_heads)
    out = jax.block_until_ready(out)

    ref = reference_forward(x, params, n_heads)
    assert out.shape == (B, S, d_model)
    err = float(jnp.max(jnp.abs(out - ref)))
    # bf16 MXU operands -> looser tolerance than the f32 reference.
    assert err < tol, f"max |err|={err} exceeds tol={tol}"


if __name__ == "__main__":
    key = jax.random.PRNGKey(0)
    k1, k2, k3 = jax.random.split(key, 3)
    # Small shape consistent with the module (single-tile path).
    _run_case(k1, B=2, S=8, d_model=32, n_heads=4, tol=5e-2)
    # Larger heads / hd=128: lane-dense attention tiles, fused QKV projection.
    _run_case(k2, B=2, S=256, d_model=256, n_heads=2, tol=5e-2)
    # Ragged S: exercises padding, the triangular multi-step grid, masked and
    # unmasked KV tiles, and the rows-capped q tiling (tq < S).
    _run_case(k3, B=2, S=320, d_model=256, n_heads=8, tol=1e-1)
    print("KERNEL_OK")
</pallas_src>

<mosaic_0001>
module attributes {stable_mosaic.version = 11 : i64} {
  func.func @_linear_kernel(%arg0: i32, %arg1: i32, %arg2: i32, %arg3: memref<16x32xbf16, #tpu.memory_space<vmem>>, %arg4: memref<32x48xbf16, #tpu.memory_space<vmem>>, %arg5: memref<1x48xf32, #tpu.memory_space<vmem>>, %arg6: memref<16x48xbf16, #tpu.memory_space<vmem>>, %arg7: memref<16x48xf32, #tpu.memory_space<vmem>>) attributes {dimension_semantics = [#tpu.dimension_semantics<parallel>, #tpu.dimension_semantics<parallel>, #tpu.dimension_semantics<arbitrary>], iteration_bounds = array<i64: 1, 1, 1>, scalar_prefetch = 0 : i64, scratch_operands = 1 : i64, tpu.core_type = #tpu.core_type<tc>, window_params = [{transform_indices = @transform_0, window_bounds = array<i64: 16, 32>}, {transform_indices = @transform_1, window_bounds = array<i64: 32, 48>}, {transform_indices = @transform_2, window_bounds = array<i64: 1, 48>}, {transform_indices = @transform_3, window_bounds = array<i64: 16, 48>}]} {
    %c0_i32 = arith.constant 0 : i32
    %0 = arith.cmpi eq, %arg2, %c0_i32 : i32
    %1 = arith.extui %0 : i1 to i32
    %c0_i32_0 = arith.constant 0 : i32
    %2 = arith.cmpi ne, %1, %c0_i32_0 : i32
    scf.if %2 {
      %cst_10 = arith.constant 0.000000e+00 : f32
      %12 = vector.broadcast %cst_10 : f32 to vector<16x48xf32>
      %c0_11 = arith.constant 0 : index
      %c0_12 = arith.constant 0 : index
      %13 = vector.load %arg7[%c0_11, %c0_12] : memref<16x48xf32, #tpu.memory_space<vmem>>, vector<16x48xf32>
      tpu.vector_store %arg7[%c0_11, %c0_12], %12 {strides = array<i32>} : memref<16x48xf32, #tpu.memory_space<vmem>>, vector<16x48xf32>,
    } else {
    }
    %c0 = arith.constant 0 : index
    %c0_1 = arith.constant 0 : index
    %3 = vector.load %arg7[%c0, %c0_1] : memref<16x48xf32, #tpu.memory_space<vmem>>, vector<16x48xf32>
    %c0_2 = arith.constant 0 : index
    %c0_3 = arith.constant 0 : index
    %4 = vector.load %arg3[%c0_2, %c0_3] : memref<16x32xbf16, #tpu.memory_space<vmem>>, vector<16x32xbf16>
    %c0_4 = arith.constant 0 : index
    %c0_5 = arith.constant 0 : index
    %5 = vector.load %arg4[%c0_4, %c0_5] : memref<32x48xbf16, #tpu.memory_space<vmem>>, vector<32x48xbf16>
    %cst = arith.constant dense<0.000000e+00> : vector<16x48xf32>
    %6 = tpu.matmul %4, %5, %cst {dimension_numbers = #tpu.dot_dimension_numbers<[1], [0], [0], [1], [0, 0, 1, 1], [], []>} : vector<16x32xbf16>, vector<32x48xbf16>, vector<16x48xf32> -> vector<16x48xf32>
    %7 = arith.addf %3, %6 : vector<16x48xf32>
    %c0_6 = arith.constant 0 : index
    %c0_7 = arith.constant 0 : index
    %8 = vector.load %arg7[%c0_6, %c0_7] : memref<16x48xf32, #tpu.memory_space<vmem>>, vector<16x48xf32>
    tpu.vector_store %arg7[%c0_6, %c0_7], %7 {strides = array<i32>} : memref<16x48xf32, #tpu.memory_space<vmem>>, vector<16x48xf32>,
    %c0_i32_8 = arith.constant 0 : i32
    %9 = arith.cmpi eq, %arg2, %c0_i32_8 : i32
    %10 = arith.extui %9 : i1 to i32
    %c0_i32_9 = arith.constant 0 : i32
    %11 = arith.cmpi ne, %10, %c0_i32_9 : i32
    scf.if %11 {
      %c0_10 = arith.constant 0 : index
      %c0_11 = arith.constant 0 : index
      %12 = vector.load %arg7[%c0_10, %c0_11] : memref<16x48xf32, #tpu.memory_space<vmem>>, vector<16x48xf32>
      %c0_12 = arith.constant 0 : index
      %c0_13 = arith.constant 0 : index
      %13 = vector.load %arg5[%c0_12, %c0_13] : memref<1x48xf32, #tpu.memory_space<vmem>>, vector<1x48xf32>
      %14 = vector.broadcast %13 : vector<1x48xf32> to vector<16x48xf32>
      %15 = arith.addf %12, %14 : vector<16x48xf32>
      %16 = arith.truncf %15 : vector<16x48xf32> to vector<16x48xbf16>
      %c0_14 = arith.constant 0 : index
      %c0_15 = arith.constant 0 : index
      %17 = vector.load %arg6[%c0_14, %c0_15] : memref<16x48xbf16, #tpu.memory_space<vmem>>, vector<16x48xbf16>
      tpu.vector_store %arg6[%c0_14, %c0_15], %16 {strides = array<i32>} : memref<16x48xbf16, #tpu.memory_space<vmem>>, vector<16x48xbf16>,
    } else {
    }
    return
  }
  func.func @transform_0(%arg0: i32, %arg1: i32, %arg2: i32) -> (i32, i32) {
    %c0_i32 = arith.constant 0 : i32
    return %arg0, %arg2 : i32, i32
  }
  func.func @transform_1(%arg0: i32, %arg1: i32, %arg2: i32) -> (i32, i32) {
    %c0_i32 = arith.constant 0 : i32
    return %arg2, %arg1 : i32, i32
  }
  func.func @transform_2(%arg0: i32, %arg1: i32, %arg2: i32) -> (i32, i32) {
    %c0_i32 = arith.constant 0 : i32
    %c0_i32_0 = arith.constant 0 : i32
    return %c0_i32, %arg1 : i32, i32
  }
  func.func @transform_3(%arg0: i32, %arg1: i32, %arg2: i32) -> (i32, i32) {
    %c0_i32 = arith.constant 0 : i32
    return %arg0, %arg1 : i32, i32
  }
}

</mosaic_0001>

<llo_original>
// kernel: tpu_custom_call.1
$region0: #{tpu_custom_call.1}
  #allocation0 [shape = 'u32[]', space=smem, size = 0x4, offset = 0x4, fixed_abs, tag = 'smem constant byte address 0x4 - core index']
  #allocation1 [shape = 'u32[72,128]{1,0:T(1,128)}', space=vmem, size = 0x9000, scoped, tag = 'internal scratch']
  #allocation2 [shape = 'f32[16,48]{1,0:T(8,128)}', space=vmem, size = 0x2000, scoped, tag = 'scratch operand']
  %s0 = inlined_call_operand.hbm [shape: bf16[16,32], index: 0, kind: input, shape index: {}]
  %s1 = inlined_call_operand.hbm [shape: bf16[32,48], index: 1, kind: input, shape index: {}]
  %s2 = inlined_call_operand.vmem [shape: f32[1,48], index: 2, kind: input, shape index: {}]
  %s3 = inlined_call_operand.hbm [shape: bf16[16,48], index: 3, kind: output, shape index: {}]
  %s4 = sld [smem:[#allocation0]]
  $region38: #{tpu_custom_call.1} parent=0
    _
  %s6 = ssub.s32 1, %s4
  %s7 = scalar_select 0, %s6, %s4
  $region1: #{tpu_custom_call.1} parent=0
    #allocation3 [shape = 'u8[4096]{0}', space=vmem, size = 0x1000, scoped, tag = 'input window, operand 0, single buffered']
    #allocation4 [shape = 's32[1]{0}', space=sflag, size = 0x4, scoped, tag = 'scoped memory for tpu_custom_call.1']
    #allocation5 [shape = 's32[1]{0}', space=sflag, size = 0x4, scoped, tag = 'scoped memory for tpu_custom_call.1']
    #allocation6 [shape = 'u8[8192]{0}', space=vmem, size = 0x2000, scoped, tag = 'input window, operand 1, single buffered']
    #allocation7 [shape = 's32[1]{0}', space=sflag, size = 0x4, scoped, tag = 'scoped memory for tpu_custom_call.1']
    #allocation8 [shape = 'u8[4096]{0}', space=vmem, size = 0x1000, scoped, tag = 'output window, operand 0, single buffered']
    %8 = vsyncpa [#allocation4], 0
    %9 = vsyncpa [#allocation7], 0
    %10 = vsyncpa [#allocation5], 0
    // Predicated region
    $region2: #{tpu_custom_call.1} parent=1 // pred_check
      _
    $region3: #{tpu_custom_call.1} parent=1 // pred_check_branch
      %12 = sbr.rel (0) target = $region5
    $region4: #{tpu_custom_call.1} parent=1 // pred_region
      %14 = vsyncadd [#allocation4], 0
      %s15 = sshll.u32 %s0, 4
      %s16 = int_to_ptr.hbm [resolvable:$true] %s15
      %s17 = sshll.u32 [#allocation3], 4
      %s18 = int_to_ptr.vmem [resolvable:$true] %s17
      %23 = dma.hbm_to_vmem [thread:$0]  %s16, 128, %s18, [#allocation4], 64, 64, 4
    $region5: #{tpu_custom_call.1} parent=1 // pred_fallthru
      _
    // Predicated region
    $region6: #{tpu_custom_call.1} parent=1 // pred_check
      _
    $region7: #{tpu_custom_call.1} parent=1 // pred_check_branch
      %25 = sbr.rel (0) target = $region9
    $region8: #{tpu_custom_call.1} parent=1 // pred_region
      %27 = vsyncadd [#allocation7], 0
      %s28 = sshll.u32 %s1, 4
      %s29 = int_to_ptr.hbm [resolvable:$true] %s28
      %s30 = sshll.u32 [#allocation6], 4
      %s31 = int_to_ptr.vmem [resolvable:$true] %s30
      %36 = dma.hbm_to_vmem [thread:$0]  %s29, 256, %s31, [#allocation7], 64, 64, 4
    $region9: #{tpu_custom_call.1} parent=1 // pred_fallthru
      _
    // Predicated region
    $region10: #{tpu_custom_call.1} parent=1 // pred_check
      _
    $region11: #{tpu_custom_call.1} parent=1 // pred_check_branch
      %38 = sbr.rel (0) target = $region13
    $region12: #{tpu_custom_call.1} parent=1 // pred_region
      _
    $region13: #{tpu_custom_call.1} parent=1 // pred_fallthru
      _
    // Predicated region
    $region14: #{tpu_custom_call.1} parent=1 // pred_check
      _
    $region15: #{tpu_custom_call.1} parent=1 // pred_check_branch
      %40 = sbr.rel (0) target = $region17
    $region16: #{tpu_custom_call.1} parent=1 // pred_region
      %42 = dma.done [#allocation4], 128
    $region17: #{tpu_custom_call.1} parent=1 // pred_fallthru
      _
    // Predicated region
    $region18: #{tpu_custom_call.1} parent=1 // pred_check
      _
    $region19: #{tpu_custom_call.1} parent=1 // pred_check_branch
      %44 = sbr.rel (0) target = $region21
    $region20: #{tpu_custom_call.1} parent=1 // pred_region
      %46 = dma.done [#allocation7], 256
    $region21: #{tpu_custom_call.1} parent=1 // pred_fallthru
      _
    %p48 = scmp.eq.s32.totalorder 0, 0
    // Predicated region
    $region22: #{tpu_custom_call.1} parent=1 // pred_check
      %p49 = pneg %p48
    $region23: #{tpu_custom_call.1} parent=1 // pred_check_branch
      %51 = sbr.rel (%p49) target = $region25
    $region24: #{tpu_custom_call.1} parent=1 // pred_region
      %vm52 = vcmask 392192
      %53 = vst.msk [vmem:[#allocation2] sm:$0xff] %vm52, 0.0
      %54 = vst.msk [vmem:[#allocation2 + $0x8] sm:$0xff] %vm52, 0.0
    $region25: #{tpu_custom_call.1} parent=1 // pred_fallthru
      _
    %v55 = vld [vmem:[#allocation2] sm:$0xff]
    %v56 = vld [vmem:[#allocation2 + $0x8] sm:$0xff]
    %v57 = vld [vmem:[#allocation3] sm:$0xf]
    %v58 = vld [vmem:[#allocation3 + $0x4] sm:$0xf]
    %v59 = vld [vmem:[#allocation6] sm:$0xf]
    %v60 = vld [vmem:[#allocation6 + $0x4] sm:$0xf]
    %v61 = vld [vmem:[#allocation6 + $0x8] sm:$0xf]
    %v62 = vld [vmem:[#allocation6 + $0xc] sm:$0xf]
    %v65 = vunpack.c.l.b16 %v57
    %v66 = vunpack.c.l.b16 %v58
    %v67 = vpack.c.b16 %v66, %v65
    %v72 = vunpack.c.l.b16 %v59
    %v73 = vunpack.c.l.b16 %v60
    %v74 = vunpack.c.l.b16 %v61
    %v75 = vunpack.c.l.b16 %v62
    %v76 = vpack.c.b16 %v73, %v72
    %v77 = vpack.c.b16 %v75, %v74
    %vm80 = vcmask 261120
    %v82 = vsel %vm80, %v67, 0
    %84 = vmatpush.bf16.msra.mxu0 0
    %85 = vmatpush.bf16.msra.mxu0 0
    %86 = vmatpush.bf16.msra.mxu0 0
    %87 = vmatpush.bf16.msra.mxu0 0
    %88 = vmatpush.bf16.msra.mxu0 0
    %89 = vmatpush.bf16.msra.mxu0 0
    %90 = vmatpush.bf16.msra.mxu0 %v77
    %91 = vmatpush.bf16.msra.mxu0 %v76
    %92 = vmatmul.bf16.gmra.mxu0 %v82
    %v93 = vpop.f32.mrf.mxu0
    %v94 = vadd.f32 0.0, %v93
    %v95 = vpop.f32.mrf.mxu0
    %v96 = vadd.f32 0.0, %v95
    %97 = vdwg.mxu0
    %v98 = vadd.f32 %v55, %v94
    %v99 = vadd.f32 %v56, %v96
    %vm100 = vcmask 392192
    %101 = vst.msk [vmem:[#allocation2] sm:$0xff] %vm100, %v98
    %102 = vst.msk [vmem:[#allocation2 + $0x8] sm:$0xff] %vm100, %v99
    // Predicated region
    $region26: #{tpu_custom_call.1} parent=1 // pred_check
      %p103 = pneg %p48
    $region27: #{tpu_custom_call.1} parent=1 // pred_check_branch
      %105 = sbr.rel (%p103) target = $region29
    $region28: #{tpu_custom_call.1} parent=1 // pred_region
      %v106 = vld [vmem:[#allocation2] sm:$0xff]
      %v107 = vld [vmem:[#allocation2 + $0x8] sm:$0xff]
      %v108 = vld [vmem:[%s2] sm:$0x1]
      %v110 = vperm.slane %v108, 0
      %v112 = vadd.f32 %v106, %v110
      %v113 = vadd.f32 %v107, %v110
      %v114 = vpack.c.bf16 %v112, %v112
      %v115 = vpack.c.bf16 %v113, %v113
      %vm116 = vcmask 388096
      %117 = vst.msk [vmem:[#allocation8] sm:$0xf] %vm116, %v114
      %118 = vst.msk [vmem:[#allocation8 + $0x4] sm:$0xf] %vm116, %v115
    $region29: #{tpu_custom_call.1} parent=1 // pred_fallthru
      _
    // Predicated region
    $region30: #{tpu_custom_call.1} parent=1 // pred_check
      _
    $region31: #{tpu_custom_call.1} parent=1 // pred_check_branch
      %120 = sbr.rel (0) target = $region33
    $region32: #{tpu_custom_call.1} parent=1 // pred_region
      %122 = vsyncadd [#allocation5], 0
      %s123 = sshll.u32 [#allocation8], 4
      %s124 = int_to_ptr.vmem [resolvable:$true] %s123
      %s125 = sshll.u32 %s3, 4
      %s126 = int_to_ptr.hbm [resolvable:$true] %s125
      %131 = dma.vmem_to_hbm [thread:$0]  %s124, 128, %s126, [#allocation5], 64, 64, 4
    $region33: #{tpu_custom_call.1} parent=1 // pred_fallthru
      _
    // Predicated region
    $region34: #{tpu_custom_call.1} parent=1 // pred_check
      _
    $region35: #{tpu_custom_call.1} parent=1 // pred_check_branch
      %133 = sbr.rel (0) target = $region37
    $region36: #{tpu_custom_call.1} parent=1 // pred_region
      %135 = dma.done [#allocation5], 128
    $region37: #{tpu_custom_call.1} parent=1 // pred_fallthru
      _
    %136 = vsyncpa [#allocation4], 1
    %137 = vsyncpa [#allocation7], 1
    %138 = vsyncpa [#allocation5], 1

</llo_original>
